<compile_context>
chip_gen: v6e
topology: v6e:2x2x1
jax: 0.10.0
libtpu: 0.0.40
codegen_flags: <defaults>
</compile_context>

<pallas_src>
import functools

import jax
import jax.numpy as jnp
from jax import lax
from jax.experimental import pallas as pl
from jax.experimental.pallas import tpu as pltpu


def _round_up(x, m):
    return ((x + m - 1) // m) * m


def _choose_tile_rows(nhw, target):
    """Largest multiple-of-8 divisor of nhw that is <= target (else nhw)."""
    if nhw <= target:
        return nhw
    best = None
    t = 8
    while t <= target:
        if nhw % t == 0:
            best = t
        t += 8
    return best if best is not None else nhw


# ---------------------------------------------------------------------------
# Kernel: conv-GEMM (+bias, ReLU) -> on-chip pooling matmul into a VMEM
# accumulator -> attrs head on the last grid step.
# ---------------------------------------------------------------------------
def _make_kernel(hw, nhw, tile_m, n_pad):
    inv_hw = 1.0 / float(hw)

    def kernel(patches_ref, wconv_ref, convb_ref, wattr_ref, out_ref, acc_ref):
        step = pl.program_id(0)

        @pl.when(step == 0)
        def _init():
            acc_ref[...] = jnp.zeros_like(acc_ref)

        # Conv as one GEMM for this row tile: (tile_m, CKK) @ (CKK, F) -> f32.
        conv = jnp.dot(patches_ref[...], wconv_ref[...],
                       preferred_element_type=jnp.float32)
        act = jnp.maximum(conv + convb_ref[...], 0.0)            # (tile_m, F)

        # Pooling matrix for this tile built on-chip (VPU iota/compare):
        # pool[n, r] = 1/HW iff global row step*tile_m + r belongs to image n.
        gcol = step * tile_m + lax.broadcasted_iota(jnp.int32, (n_pad, tile_m), 1)
        rown = lax.broadcasted_iota(jnp.int32, (n_pad, tile_m), 0)
        start = rown * hw
        in_img = (gcol >= start) & (gcol < start + hw) & (gcol < nhw)
        pool = jnp.where(in_img, jnp.float32(inv_hw), jnp.float32(0.0))

        # Running pooled sum: (n_pad, tile_m) @ (tile_m, F) accumulated in VMEM.
        acc_ref[...] += jnp.dot(pool, act, preferred_element_type=jnp.float32)

        @pl.when(step == pl.num_programs(0) - 1)
        def _finalize():
            # attrs head once for all images: (n_pad, F) @ (F, A_PAD).
            out_ref[...] = jnp.dot(acc_ref[...], wattr_ref[...],
                                   preferred_element_type=jnp.float32)

    return kernel


# ---------------------------------------------------------------------------
# Parameter preprocessing — do this ONCE (cached), not per forward call.
# ---------------------------------------------------------------------------
def prepare_params(conv_w, conv_b, attr_w, attr_b, a_pad=128):
    f_out, c, kh, kw = conv_w.shape
    a = attr_w.shape[0]
    ckk = c * kh * kw
    wconv = conv_w.reshape(f_out, ckk).T.astype(jnp.bfloat16)       # (CKK, F)
    convb = conv_b.reshape(1, f_out).astype(jnp.float32)            # (1, F)
    wattr = jnp.zeros((f_out, a_pad), jnp.float32).at[:, :a].set(
        attr_w.T.astype(jnp.float32))                               # (F, A_PAD)
    battr = attr_b.astype(jnp.float32)                              # (A,)
    return {"wconv": wconv, "convb": convb, "wattr": wattr, "battr": battr}


# ---------------------------------------------------------------------------
# Forward wrapper
# ---------------------------------------------------------------------------
def attr_model_forward(x, params, *, kernel_size=(3, 3), padding=(1, 1),
                       tile_rows=2048, interpret=False):
    N, C, H, W = x.shape
    KH, KW = kernel_size
    wconv = params["wconv"]        # (CKK, F) bf16
    convb = params["convb"]        # (1, F)   f32
    wattr = params["wattr"]        # (F, A_PAD) f32
    battr = params["battr"]        # (A,)     f32
    ckk, F_out = wconv.shape
    a_pad = wattr.shape[1]
    A = battr.shape[0]
    assert ckk == C * KH * KW, "prepared conv weight does not match input channels"

    HW = H * W
    NHW = N * HW
    N_PAD = max(8, _round_up(N, 8))

    tile_m = _choose_tile_rows(NHW, tile_rows)
    num_tiles = NHW // tile_m

    # im2col as a single fused op, directly in bf16, NHWC layout so the
    # reshape to (NHW, CKK) is contiguous (no extra HBM copy, no K padding).
    # Channel ordering of the patch dim is (C, KH, KW) == PyTorch flattening.
    patches = lax.conv_general_dilated_patches(
        x.astype(jnp.bfloat16), filter_shape=(KH, KW), window_strides=(1, 1),
        padding=((padding[0], padding[0]), (padding[1], padding[1])),
        dimension_numbers=("NCHW", "OIHW", "NHWC"))
    patches = patches.reshape(NHW, ckk)                             # (NHW, CKK) bf16

    kernel = _make_kernel(HW, NHW, tile_m, N_PAD)

    flops = (2 * NHW * ckk * F_out            # conv GEMM
             + 2 * N_PAD * NHW * F_out        # pooling matmul
             + 2 * N_PAD * F_out * a_pad)     # attrs head
    bytes_accessed = (NHW * ckk * 2 + ckk * F_out * 2 + F_out * 4
                      + F_out * a_pad * 4 + N_PAD * a_pad * 4)

    out_pad = pl.pallas_call(
        kernel,
        out_shape=jax.ShapeDtypeStruct((N_PAD, a_pad), jnp.float32),
        grid=(num_tiles,),
        in_specs=[
            pl.BlockSpec((tile_m, ckk), lambda i: (i, 0)),    # patch rows (pipelined)
            pl.BlockSpec((ckk, F_out), lambda i: (0, 0)),     # conv weight (resident)
            pl.BlockSpec((1, F_out), lambda i: (0, 0)),       # conv bias
            pl.BlockSpec((F_out, a_pad), lambda i: (0, 0)),   # attrs head weight
        ],
        out_specs=pl.BlockSpec((N_PAD, a_pad), lambda i: (0, 0)),
        scratch_shapes=[pltpu.VMEM((N_PAD, F_out), jnp.float32)],
        compiler_params=pltpu.CompilerParams(
            dimension_semantics=("arbitrary",),     # reduction into VMEM accumulator
            vmem_limit_bytes=64 * 1024 * 1024),
        cost_estimate=pl.CostEstimate(flops=flops, transcendentals=0,
                                      bytes_accessed=bytes_accessed),
        interpret=interpret,
    )(patches, wconv, convb, wattr)

    # attrs bias added on the tiny sliced result (cheaper than an extra DMA stream).
    return out_pad[:N, :A] + battr[None, :]


# ---------------------------------------------------------------------------
# Pure-JAX reference (same math, no Pallas) for a sanity check
# ---------------------------------------------------------------------------
def reference_forward(x, conv_w, conv_b, attr_w, attr_b):
    conv = jax.lax.conv_general_dilated(
        x, conv_w, window_strides=(1, 1), padding="SAME",
        dimension_numbers=("NCHW", "OIHW", "NCHW"))
    conv = conv + conv_b.reshape(1, -1, 1, 1)
    act = jnp.maximum(conv, 0.0)
    feat = jnp.mean(act, axis=(2, 3))                 # global avg pool -> (N, F)
    return feat @ attr_w.T + attr_b


if __name__ == "__main__":
    # Small deterministic config: batch=2, channels=4, spatial=16x16,
    # num_feat=32 encoder features, num_attrs=7.
    N, C, H, W = 2, 4, 16, 16
    NUM_FEAT, NUM_ATTRS = 32, 7

    key = jax.random.PRNGKey(0)
    kx, kw1, kb1, kw2, kb2 = jax.random.split(key, 5)

    x = jax.random.normal(kx, (N, C, H, W), dtype=jnp.float32)
    conv_w = 0.1 * jax.random.normal(kw1, (NUM_FEAT, C, 3, 3), dtype=jnp.float32)
    conv_b = 0.1 * jax.random.normal(kb1, (NUM_FEAT,), dtype=jnp.float32)
    attr_w = 0.1 * jax.random.normal(kw2, (NUM_ATTRS, NUM_FEAT), dtype=jnp.float32)
    attr_b = 0.1 * jax.random.normal(kb2, (NUM_ATTRS,), dtype=jnp.float32)

    # Weight prep is done once and cached; forward is jitted as one program.
    params = prepare_params(conv_w, conv_b, attr_w, attr_b)
    # tile_rows=128 -> 4 grid steps at this size, exercising the accumulator path.
    fwd = jax.jit(functools.partial(attr_model_forward, tile_rows=128))

    out = fwd(x, params)
    jax.block_until_ready(out)

    ref = reference_forward(x, conv_w, conv_b, attr_w, attr_b)
    assert out.shape == (N, NUM_ATTRS)
    # bf16 operands / f32 accumulation vs. the all-f32 reference.
    assert jnp.allclose(out, ref, atol=1e-2, rtol=1e-2), (
        f"max abs err {jnp.max(jnp.abs(out - ref))}")

    print("KERNEL_OK")
</pallas_src>

<mosaic_0001>
module attributes {stable_mosaic.version = 11 : i64} {
  func.func @kernel(%arg0: i32, %arg1: memref<128x36xbf16, #tpu.memory_space<vmem>>, %arg2: memref<36x32xbf16, #tpu.memory_space<vmem>>, %arg3: memref<1x32xf32, #tpu.memory_space<vmem>>, %arg4: memref<32x128xf32, #tpu.memory_space<vmem>>, %arg5: memref<8x128xf32, #tpu.memory_space<vmem>>, %arg6: memref<8x32xf32, #tpu.memory_space<vmem>>) attributes {dimension_semantics = [#tpu.dimension_semantics<arbitrary>], iteration_bounds = array<i64: 4>, scalar_prefetch = 0 : i64, scratch_operands = 1 : i64, tpu.core_type = #tpu.core_type<tc>, window_params = [{transform_indices = @transform_0, window_bounds = array<i64: 128, 36>}, {pipeline_mode = #tpu.pipeline_mode<synchronous>, transform_indices = @transform_1, window_bounds = array<i64: 36, 32>}, {pipeline_mode = #tpu.pipeline_mode<synchronous>, transform_indices = @transform_2, window_bounds = array<i64: 1, 32>}, {pipeline_mode = #tpu.pipeline_mode<synchronous>, transform_indices = @transform_3, window_bounds = array<i64: 32, 128>}, {pipeline_mode = #tpu.pipeline_mode<synchronous>, transform_indices = @transform_4, window_bounds = array<i64: 8, 128>}]} {
    %c0_i32 = arith.constant 0 : i32
    %0 = arith.cmpi eq, %arg0, %c0_i32 : i32
    %1 = arith.extui %0 : i1 to i32
    %c0_i32_0 = arith.constant 0 : i32
    %2 = arith.cmpi ne, %1, %c0_i32_0 : i32
    scf.if %2 {
      %cst_16 = arith.constant 0.000000e+00 : f32
      %36 = vector.broadcast %cst_16 : f32 to vector<8x32xf32>
      %c0_17 = arith.constant 0 : index
      %c0_18 = arith.constant 0 : index
      %37 = vector.load %arg6[%c0_17, %c0_18] : memref<8x32xf32, #tpu.memory_space<vmem>>, vector<8x32xf32>
      tpu.vector_store %arg6[%c0_17, %c0_18], %36 {strides = array<i32>} : memref<8x32xf32, #tpu.memory_space<vmem>>, vector<8x32xf32>,
    } else {
    }
    %c0 = arith.constant 0 : index
    %c0_1 = arith.constant 0 : index
    %3 = vector.load %arg1[%c0, %c0_1] : memref<128x36xbf16, #tpu.memory_space<vmem>>, vector<128x36xbf16>
    %c0_2 = arith.constant 0 : index
    %c0_3 = arith.constant 0 : index
    %4 = vector.load %arg2[%c0_2, %c0_3] : memref<36x32xbf16, #tpu.memory_space<vmem>>, vector<36x32xbf16>
    %cst = arith.constant dense<0.000000e+00> : vector<128x32xf32>
    %5 = tpu.matmul %3, %4, %cst {dimension_numbers = #tpu.dot_dimension_numbers<[1], [0], [0], [1], [0, 0, 1, 1], [], []>} : vector<128x36xbf16>, vector<36x32xbf16>, vector<128x32xf32> -> vector<128x32xf32>
    %c0_4 = arith.constant 0 : index
    %c0_5 = arith.constant 0 : index
    %6 = vector.load %arg3[%c0_4, %c0_5] : memref<1x32xf32, #tpu.memory_space<vmem>>, vector<1x32xf32>
    %7 = vector.broadcast %6 : vector<1x32xf32> to vector<128x32xf32>
    %8 = arith.addf %5, %7 : vector<128x32xf32>
    %cst_6 = arith.constant 0.000000e+00 : f32
    %9 = vector.broadcast %cst_6 : f32 to vector<128x32xf32>
    %10 = arith.maximumf %8, %9 : vector<128x32xf32>
    %c128_i32 = arith.constant 128 : i32
    %11 = arith.muli %arg0, %c128_i32 : i32
    %12 = tpu.iota {dimensions = array<i32: 1>} : vector<8x128xi32>
    %13 = vector.broadcast %11 : i32 to vector<8x128xi32>
    %14 = arith.addi %13, %12 : vector<8x128xi32>
    %15 = tpu.iota {dimensions = array<i32: 0>} : vector<8x128xi32>
    %c256_i32 = arith.constant 256 : i32
    %16 = vector.broadcast %c256_i32 : i32 to vector<8x128xi32>
    %17 = arith.muli %15, %16 : vector<8x128xi32>
    %18 = arith.cmpi sge, %14, %17 : vector<8x128xi32>
    %c256_i32_7 = arith.constant 256 : i32
    %19 = vector.broadcast %c256_i32_7 : i32 to vector<8x128xi32>
    %20 = arith.addi %17, %19 : vector<8x128xi32>
    %21 = arith.cmpi slt, %14, %20 : vector<8x128xi32>
    %22 = arith.andi %18, %21 : vector<8x128xi1>
    %c512_i32 = arith.constant 512 : i32
    %23 = vector.broadcast %c512_i32 : i32 to vector<8x128xi32>
    %24 = arith.cmpi slt, %14, %23 : vector<8x128xi32>
    %25 = arith.andi %22, %24 : vector<8x128xi1>
    %cst_8 = arith.constant 3.906250e-03 : f32
    %cst_9 = arith.constant 0.000000e+00 : f32
    %26 = vector.broadcast %cst_8 : f32 to vector<8x128xf32>
    %27 = vector.broadcast %cst_9 : f32 to vector<8x128xf32>
    %28 = arith.select %25, %26, %27 : vector<8x128xi1>, vector<8x128xf32>
    %c0_10 = arith.constant 0 : index
    %c0_11 = arith.constant 0 : index
    %29 = vector.load %arg6[%c0_10, %c0_11] : memref<8x32xf32, #tpu.memory_space<vmem>>, vector<8x32xf32>
    %cst_12 = arith.constant dense<0.000000e+00> : vector<8x32xf32>
    %30 = tpu.matmul %28, %10, %cst_12 {dimension_numbers = #tpu.dot_dimension_numbers<[1], [0], [0], [1], [0, 0, 1, 1], [], []>} : vector<8x128xf32>, vector<128x32xf32>, vector<8x32xf32> -> vector<8x32xf32>
    %31 = arith.addf %29, %30 : vector<8x32xf32>
    %c0_13 = arith.constant 0 : index
    %c0_14 = arith.constant 0 : index
    %32 = vector.load %arg6[%c0_13, %c0_14] : memref<8x32xf32, #tpu.memory_space<vmem>>, vector<8x32xf32>
    tpu.vector_store %arg6[%c0_13, %c0_14], %31 {strides = array<i32>} : memref<8x32xf32, #tpu.memory_space<vmem>>, vector<8x32xf32>,
    %c3_i32 = arith.constant 3 : i32
    %33 = arith.cmpi eq, %arg0, %c3_i32 : i32
    %34 = arith.extui %33 : i1 to i32
    %c0_i32_15 = arith.constant 0 : i32
    %35 = arith.cmpi ne, %34, %c0_i32_15 : i32
    scf.if %35 {
      %c0_16 = arith.constant 0 : index
      %c0_17 = arith.constant 0 : index
      %36 = vector.load %arg6[%c0_16, %c0_17] : memref<8x32xf32, #tpu.memory_space<vmem>>, vector<8x32xf32>
      %c0_18 = arith.constant 0 : index
      %c0_19 = arith.constant 0 : index
      %37 = vector.load %arg4[%c0_18, %c0_19] : memref<32x128xf32, #tpu.memory_space<vmem>>, vector<32x128xf32>
      %cst_20 = arith.constant dense<0.000000e+00> : vector<8x128xf32>
      %38 = tpu.matmul %36, %37, %cst_20 {dimension_numbers = #tpu.dot_dimension_numbers<[1], [0], [0], [1], [0, 0, 1, 1], [], []>} : vector<8x32xf32>, vector<32x128xf32>, vector<8x128xf32> -> vector<8x128xf32>
      %c0_21 = arith.constant 0 : index
      %c0_22 = arith.constant 0 : index
      %39 = vector.load %arg5[%c0_21, %c0_22] : memref<8x128xf32, #tpu.memory_space<vmem>>, vector<8x128xf32>
      tpu.vector_store %arg5[%c0_21, %c0_22], %38 {strides = array<i32>} : memref<8x128xf32, #tpu.memory_space<vmem>>, vector<8x128xf32>,
    } else {
    }
    return
  }
  func.func @transform_0(%arg0: i32) -> (i32, i32) {
    %c0_i32 = arith.constant 0 : i32
    %c0_i32_0 = arith.constant 0 : i32
    return %arg0, %c0_i32 : i32, i32
  }
  func.func @transform_1(%arg0: i32) -> (i32, i32) {
    %c0_i32 = arith.constant 0 : i32
    %c0_i32_0 = arith.constant 0 : i32
    %c0_i32_1 = arith.constant 0 : i32
    return %c0_i32, %c0_i32_0 : i32, i32
  }
  func.func @transform_2(%arg0: i32) -> (i32, i32) {
    %c0_i32 = arith.constant 0 : i32
    %c0_i32_0 = arith.constant 0 : i32
    %c0_i32_1 = arith.constant 0 : i32
    return %c0_i32, %c0_i32_0 : i32, i32
  }
  func.func @transform_3(%arg0: i32) -> (i32, i32) {
    %c0_i32 = arith.constant 0 : i32
    %c0_i32_0 = arith.constant 0 : i32
    %c0_i32_1 = arith.constant 0 : i32
    return %c0_i32, %c0_i32_0 : i32, i32
  }
  func.func @transform_4(%arg0: i32) -> (i32, i32) {
    %c0_i32 = arith.constant 0 : i32
    %c0_i32_0 = arith.constant 0 : i32
    %c0_i32_1 = arith.constant 0 : i32
    return %c0_i32, %c0_i32_0 : i32, i32
  }
}

</mosaic_0001>

<llo_original>
// kernel: attr_model_forward.1
$region0: #{attr_model_forward.1}
  #allocation0 [shape = 'u32[]', space=smem, size = 0x4, offset = 0x4, fixed_abs, tag = 'smem constant byte address 0x4 - core index']
  #allocation1 [shape = 'u32[144,128]{1,0:T(1,128)}', space=vmem, size = 0x12000, scoped, tag = 'internal scratch']
  #allocation2 [shape = 'f32[8,32]{1,0:T(8,128)}', space=vmem, size = 0x1000, scoped, tag = 'scratch operand']
  %s0 = inlined_call_operand.vmem [shape: bf16[512,36], index: 0, kind: input, shape index: {}]
  %s1 = inlined_call_operand.vmem [shape: bf16[36,32], index: 1, kind: input, shape index: {}]
  %s2 = inlined_call_operand.vmem [shape: f32[1,32], index: 2, kind: input, shape index: {}]
  %s3 = inlined_call_operand.vmem [shape: f32[32,128], index: 3, kind: input, shape index: {}]
  %s4 = inlined_call_operand.vmem [shape: f32[8,128], index: 4, kind: output, shape index: {}]
  %s5 = sld [smem:[#allocation0]]
  $region57: #{attr_model_forward.1} parent=0
    _
  %s7 = ssub.s32 1, %s5
  %s8 = scalar_select 0, %s7, %s5
  loop: start=0, step=1, limit=6
  $region2: #{attr_model_forward.1} parent=0 // loop_pre_header
    _
  $region3: #{attr_model_forward.1} parent=0 // loop_header
    %s10 = sphi 0, %s14
    %p11 = scmp.ge.s32.totalorder %s10, 6
    %s20 = sphi 0, %s22
    %s23 = sphi 0, %s20
    %s24 = sphi 0, %s23
    %s40 = sphi 0, %s24
    %s44 = sphi 0, %s44
    %s46 = sphi 0, %s44
    %s47 = sphi 0, %s46
    %s61 = sphi 0, %s47
    %s65 = sphi 0, %s65
    %s67 = sphi 0, %s65
    %s68 = sphi 0, %s67
    %s82 = sphi 0, %s68
    %s86 = sphi 0, %s86
    %s88 = sphi 0, %s86
    %s89 = sphi 0, %s88
    %s103 = sphi 0, %s89
    %s107 = sphi 0, %s107
    %s109 = sphi 0, %s107
    %s110 = sphi 0, %s109
    %s124 = sphi 0, %s110
  $region4: #{attr_model_forward.1} parent=0 // loop_header_branch
    %13 = sbr.rel (%p11) target = $region8
  $region5: #{attr_model_forward.1} parent=0 // loop_body
    %s15 = ssub.s32 %s10, 1
    %s16 = ssub.s32 %s10, 2
    %s17 = sadd.s32 %s10, 1
    %s18 = ssub.s32 %s10, %s17
    %p19 = scmp.eq.s32.totalorder %s18, 0
    %s21 = sadd.s32 %s20, 1
    %s22 = scalar_select %p19, %s20, %s21
    %p25 = pneg %p19
    %p26 = scmp.eq.s32.totalorder %s10, 3
    %p27 = por %p25, %p26
    %p28 = scmp.ne.s32.totalorder %s20, %s23
    %p29 = scmp.eq.s32.totalorder %s10, 0
    %p30 = por %p28, %p29
    %p31 = scmp.ne.s32.totalorder %s20, %s23
    %p32 = scmp.eq.s32.totalorder %s15, 3
    %p33 = por %p31, %p32
    %p34 = scmp.ne.s32.totalorder %s23, %s24
    %p35 = scmp.eq.s32.totalorder %s15, 0
    %p36 = por %p34, %p35
    %p37 = scmp.ne.s32.totalorder %s23, %s24
    %p38 = scmp.eq.s32.totalorder %s16, 3
    %p39 = por %p37, %p38
    %p41 = scmp.ne.s32.totalorder %s24, %s40
    %p42 = scmp.eq.s32.totalorder %s16, 0
    %p43 = por %p41, %p42
    %s45 = sadd.s32 %s44, 1
    %p48 = scmp.eq.s32.totalorder %s10, 3
    %p49 = scmp.ne.s32.totalorder %s44, %s46
    %p50 = scmp.eq.s32.totalorder %s10, 0
    %p51 = por %p49, %p50
    %p52 = scmp.ne.s32.totalorder %s44, %s46
    %p53 = scmp.eq.s32.totalorder %s15, 3
    %p54 = por %p52, %p53
    %p55 = scmp.ne.s32.totalorder %s46, %s47
    %p56 = scmp.eq.s32.totalorder %s15, 0
    %p57 = por %p55, %p56
    %p58 = scmp.ne.s32.totalorder %s46, %s47
    %p59 = scmp.eq.s32.totalorder %s16, 3
    %p60 = por %p58, %p59
    %p62 = scmp.ne.s32.totalorder %s47, %s61
    %p63 = scmp.eq.s32.totalorder %s16, 0
    %p64 = por %p62, %p63
    %s66 = sadd.s32 %s65, 1
    %p69 = scmp.eq.s32.totalorder %s10, 3
    %p70 = scmp.ne.s32.totalorder %s65, %s67
    %p71 = scmp.eq.s32.totalorder %s10, 0
    %p72 = por %p70, %p71
    %p73 = scmp.ne.s32.totalorder %s65, %s67
    %p74 = scmp.eq.s32.totalorder %s15, 3
    %p75 = por %p73, %p74
    %p76 = scmp.ne.s32.totalorder %s67, %s68
    %p77 = scmp.eq.s32.totalorder %s15, 0
    %p78 = por %p76, %p77
    %p79 = scmp.ne.s32.totalorder %s67, %s68
    %p80 = scmp.eq.s32.totalorder %s16, 3
    %p81 = por %p79, %p80
    %p83 = scmp.ne.s32.totalorder %s68, %s82
    %p84 = scmp.eq.s32.totalorder %s16, 0
    %p85 = por %p83, %p84
    %s87 = sadd.s32 %s86, 1
    %p90 = scmp.eq.s32.totalorder %s10, 3
    %p91 = scmp.ne.s32.totalorder %s86, %s88
    %p92 = scmp.eq.s32.totalorder %s10, 0
    %p93 = por %p91, %p92
    %p94 = scmp.ne.s32.totalorder %s86, %s88
    %p95 = scmp.eq.s32.totalorder %s15, 3
    %p96 = por %p94, %p95
    %p97 = scmp.ne.s32.totalorder %s88, %s89
    %p98 = scmp.eq.s32.totalorder %s15, 0
    %p99 = por %p97, %p98
    %p100 = scmp.ne.s32.totalorder %s88, %s89
    %p101 = scmp.eq.s32.totalorder %s16, 3
    %p102 = por %p100, %p101
    %p104 = scmp.ne.s32.totalorder %s89, %s103
    %p105 = scmp.eq.s32.totalorder %s16, 0
    %p106 = por %p104, %p105
    %s108 = sadd.s32 %s107, 1
    %p111 = scmp.eq.s32.totalorder %s10, 3
    %p112 = scmp.ne.s32.totalorder %s107, %s109
    %p113 = scmp.eq.s32.totalorder %s10, 0
    %p114 = por %p112, %p113
    %p115 = scmp.ne.s32.totalorder %s107, %s109
    %p116 = scmp.eq.s32.totalorder %s15, 3
    %p117 = por %p115, %p116
    %p118 = scmp.ne.s32.totalorder %s109, %s110
    %p119 = scmp.eq.s32.totalorder %s15, 0
    %p120 = por %p118, %p119
    %p121 = scmp.ne.s32.totalorder %s109, %s110
    %p122 = scmp.eq.s32.totalorder %s16, 3
    %p123 = por %p121, %p122
    %p125 = scmp.ne.s32.totalorder %s110, %s124
    %p126 = scmp.eq.s32.totalorder %s16, 0
    %p127 = por %p125, %p126
    %p128 = scmp.le.s32.totalorder 1, %s10
    %p129 = scmp.lt.s32.totalorder %s10, 5
    %p130 = pnand %p128, %p129
    %p131 = pneg %p130
    // Predicated region
    $region9: #{attr_model_forward.1} parent=5 // pred_check
      _
    $region10: #{attr_model_forward.1} parent=5 // pred_check_branch
      %133 = sbr.rel (%p130) target = $region12
    $region11: #{attr_model_forward.1} parent=5 // pred_region
      %s134 = ssub.s32 %s10, 1
      // Predicated region
      $region13: #{attr_model_forward.1} parent=11 // pred_check
        %p135 = pneg %p57
      $region14: #{attr_model_forward.1} parent=11 // pred_check_branch
        %137 = sbr.rel (%p135) target = $region16
      $region15: #{attr_model_forward.1} parent=11 // pred_region
        _
      $region16: #{attr_model_forward.1} parent=11 // pred_fallthru
        _
      // Predicated region
      $region17: #{attr_model_forward.1} parent=11 // pred_check
        %p138 = pneg %p78
      $region18: #{attr_model_forward.1} parent=11 // pred_check_branch
        %140 = sbr.rel (%p138) target = $region20
      $region19: #{attr_model_forward.1} parent=11 // pred_region
        _
      $region20: #{attr_model_forward.1} parent=11 // pred_fallthru
        _
      // Predicated region
      $region21: #{attr_model_forward.1} parent=11 // pred_check
        %p141 = pneg %p99
      $region22: #{attr_model_forward.1} parent=11 // pred_check_branch
        %143 = sbr.rel (%p141) target = $region24
      $region23: #{attr_model_forward.1} parent=11 // pred_region
        _
      $region24: #{attr_model_forward.1} parent=11 // pred_fallthru
        _
    $region12: #{attr_model_forward.1} parent=5 // pred_fallthru
      _
    %p144 = scmp.lt.s32.totalorder %s10, 4
    // Predicated region
    $region25: #{attr_model_forward.1} parent=5 // pred_check
      %p145 = pneg %p144
    $region26: #{attr_model_forward.1} parent=5 // pred_check_branch
      %147 = sbr.rel (%p145) target = $region28
    $region27: #{attr_model_forward.1} parent=5 // pred_region
      // Predicated region
      $region29: #{attr_model_forward.1} parent=27 // pred_check
        %p148 = pneg %p30
      $region30: #{attr_model_forward.1} parent=27 // pred_check_branch
        %150 = sbr.rel (%p148) target = $region32
      $region31: #{attr_model_forward.1} parent=27 // pred_region
        %s151 = smul.u32 16, %s10
        %p152 = scmp.lt.s32.totalorder %s151, 63
        %s153 = scalar_select %p152, %s151, 63
        %s154 = smul.addr %s153, 4
        %s155 = scalar_lea.vmem %s0, %s154
        %s156 = smul.u32 16, %s10
      $region32: #{attr_model_forward.1} parent=27 // pred_fallthru
        _
    $region28: #{attr_model_forward.1} parent=5 // pred_fallthru
      _
    %p157 = scmp.le.s32.totalorder 1, %s10
    %p158 = scmp.lt.s32.totalorder %s10, 5
    %p159 = pnand %p157, %p158
    %p160 = pneg %p159
    // Predicated region
    $region33: #{attr_model_forward.1} parent=5 // pred_check
      _
    $region34: #{attr_model_forward.1} parent=5 // pred_check_branch
      %162 = sbr.rel (%p159) target = $region36
    $region35: #{attr_model_forward.1} parent=5 // pred_region
      %s163 = ssub.s32 %s10, 1
      %s164 = smul.u32 16, %s15
      %p165 = scmp.lt.s32.totalorder %s164, 63
      %s166 = scalar_select %p165, %s164, 63
      %s167 = smul.addr %s166, 4
      %s168 = scalar_lea.vmem %s0, %s167
      %p169 = pneg %p36
      %p170 = pneg %p33
      %p171 = pneg %p57
      %p172 = pneg %p54
      %p173 = pneg %p78
      %p174 = pneg %p75
      %p175 = pneg %p99
      %p176 = pneg %p96
      %p177 = pneg %p120
      %p178 = pneg %p117
      %s179 = smul.u32 16, %s15
      %p180 = scmp.lt.s32.totalorder %s179, 63
      %s181 = scalar_select %p180, %s179, 63
      %s182 = smul.addr %s181, 4
      %s183 = scalar_lea.vmem %s0, %s182
      %s184 = smul.u32 16, %s15
      %p186 = scmp.eq.s32.totalorder %s15, 0
      // Predicated region
      $region37: #{attr_model_forward.1} parent=35 // pred_check
        %p187 = pneg %p186
      $region38: #{attr_model_forward.1} parent=35 // pred_check_branch
        %189 = sbr.rel (%p187) target = $region40
      $region39: #{attr_model_forward.1} parent=35 // pred_region
        %vm190 = vcmask 261120
        %191 = vst.msk [vmem:[#allocation2] sm:$0xff] %vm190, 0.0
      $region40: #{attr_model_forward.1} parent=35 // pred_fallthru
        _
      %v192 = vld [vmem:[%s183] sm:$0xf]
      %v193 = vld [vmem:[%s183 + $0x4] sm:$0xf]
      %v194 = vld [vmem:[%s183 + $0x8] sm:$0xf]
      %v195 = vld [vmem:[%s183 + $0xc] sm:$0xf]
      %v196 = vld [vmem:[%s183 + $0x10] sm:$0xf]
      %v197 = vld [vmem:[%s183 + $0x14] sm:$0xf]
      %v198 = vld [vmem:[%s183 + $0x18] sm:$0xf]
      %v199 = vld [vmem:[%s183 + $0x1c] sm:$0xf]
      %v200 = vld [vmem:[%s183 + $0x20] sm:$0xf]
      %v201 = vld [vmem:[%s183 + $0x24] sm:$0xf]
      %v202 = vld [vmem:[%s183 + $0x28] sm:$0xf]
      %v203 = vld [vmem:[%s183 + $0x2c] sm:$0xf]
      %v204 = vld [vmem:[%s183 + $0x30] sm:$0xf]
      %v205 = vld [vmem:[%s183 + $0x34] sm:$0xf]
      %v206 = vld [vmem:[%s183 + $0x38] sm:$0xf]
      %v207 = vld [vmem:[%s183 + $0x3c] sm:$0xf]
      %v208 = vld [vmem:[%s1] sm:$0xf]
      %v209 = vld [vmem:[%s1 + $0x4] sm:$0xf]
      %v210 = vld [vmem:[%s1 + $0x8] sm:$0xf]
      %v211 = vld [vmem:[%s1 + $0xc] sm:$0xf]
      %v212 = vld [vmem:[%s1 + $0x10] sm:$0x3]
      %v213 = vld [vmem:[%s2] sm:$0x1]
      %v215 = vlaneseq
      %v216 = vshrl.u32 %v215, 7
      %v217 = vsub.s32 0, %v216
      %v218 = vrot.slane %v213, %v217
      %v236 = vunpack.c.l.b16 %v192
      %v237 = vunpack.c.l.b16 %v193
      %v238 = vunpack.c.l.b16 %v194
      %v239 = vunpack.c.l.b16 %v195
      %v240 = vunpack.c.l.b16 %v196
      %v241 = vunpack.c.l.b16 %v197
      %v242 = vunpack.c.l.b16 %v198
      %v243 = vunpack.c.l.b16 %v199
      %v244 = vunpack.c.l.b16 %v200
      %v245 = vunpack.c.l.b16 %v201
      %v246 = vunpack.c.l.b16 %v202
      %v247 = vunpack.c.l.b16 %v203
      %v248 = vunpack.c.l.b16 %v204
      %v249 = vunpack.c.l.b16 %v205
      %v250 = vunpack.c.l.b16 %v206
      %v251 = vunpack.c.l.b16 %v207
      %v252 = vpack.c.b16 %v237, %v236
      %v253 = vpack.c.b16 %v239, %v238
      %v254 = vpack.c.b16 %v241, %v240
      %v255 = vpack.c.b16 %v243, %v242
      %v256 = vpack.c.b16 %v245, %v244
      %v257 = vpack.c.b16 %v247, %v246
      %v258 = vpack.c.b16 %v249, %v248
      %v259 = vpack.c.b16 %v251, %v250
      %v265 = vunpack.c.l.b16 %v208
      %v266 = vunpack.c.l.b16 %v209
      %v267 = vunpack.c.l.b16 %v210
      %v268 = vunpack.c.l.b16 %v211
      %v269 = vunpack.c.l.b16 %v212
      %v270 = vpack.c.b16 %v266, %v265
      %v271 = vpack.c.b16 %v268, %v267
      %v272 = vpack.c.b16 %v269, %v269
      %vm275 = vcmask 293888
      %v277 = vsel %vm275, %v252, 0
      %v280 = vsel %vm275, %v253, 0
      %v283 = vsel %vm275, %v254, 0
      %v286 = vsel %vm275, %v255, 0
      %v289 = vsel %vm275, %v256, 0
      %v292 = vsel %vm275, %v257, 0
      %v295 = vsel %vm275, %v258, 0
      %v298 = vsel %vm275, %v259, 0
      %vm300 = vcmask 1041408
      %v302 = vsel %vm300, %v272, 0
      %304 = vmatprep.subr.bf16.mxu0 0
      %305 = vmatpush1.bf16.msra.mxu0 0
      %306 = vmatprep.subr.bf16.mxu0 0
      %307 = vmatpush1.bf16.msra.mxu0 0
      %308 = vmatprep.subr.bf16.mxu0 0
      %309 = vmatpush1.bf16.msra.mxu0 0
      %310 = vmatprep.subr.bf16.mxu0 0
      %311 = vmatpush1.bf16.msra.mxu0 0
      %312 = vmatprep.subr.bf16.mxu0 0
      %313 = vmatpush1.bf16.msra.mxu0 0
      %314 = vmatprep.subr.bf16.mxu0 0
      %315 = vmatpush1.bf16.msra.mxu0 %v302
      %316 = vmatprep.subr.bf16.mxu0 0
      %317 = vmatpush1.bf16.msra.mxu0 %v271
      %318 = vmatprep.subr.bf16.mxu0 0
      %319 = vmatpush1.bf16.msra.mxu0 %v270
      %320 = vmatprep.subr.bf16.mxu0 0
      %321 = vmatpush2.bf16.msra.mxu0 0
      %322 = vmatprep.subr.bf16.mxu0 0
      %323 = vmatpush2.bf16.msra.mxu0 0
      %324 = vmatprep.subr.bf16.mxu0 0
      %325 = vmatpush2.bf16.msra.mxu0 0
      %326 = vmatprep.subr.bf16.mxu0 0
      %327 = vmatpush2.bf16.msra.mxu0 0
      %328 = vmatprep.subr.bf16.mxu0 0
      %329 = vmatpush2.bf16.msra.mxu0 0
      %330 = vmatprep.subr.bf16.mxu0 0
      %331 = vmatpush2.bf16.msra.mxu0 0
      %332 = vmatprep.subr.bf16.mxu0 0
      %333 = vmatpush2.bf16.msra.mxu0 0
      %334 = vmatprep.subr.bf16.mxu0 0
      %335 = vmatpush2.bf16.msra.mxu0 0
      %336 = vmatprep.mubr.bf16.mxu0 0
      %337 = vmatmul.mubr.bf16.gmra.mxu0 %v277
      %v338 = vpop.f32.mrf.mxu0
      %v339 = vadd.f32 %v218, %v338
      %v340 = vpop.f32.mrf.mxu0
      %v341 = vpop.f32.mrf.mxu0
      %v342 = vadd.f32 %v218, %v341
      %v343 = vpop.f32.mrf.mxu0
      %344 = vmatprep.mubr.bf16.mxu0 0
      %345 = vmatmul.mubr.bf16.gmra.mxu0 %v280
      %v346 = vpop.f32.mrf.mxu0
      %v347 = vadd.f32 %v218, %v346
      %v348 = vpop.f32.mrf.mxu0
      %v349 = vpop.f32.mrf.mxu0
      %v350 = vadd.f32 %v218, %v349
      %v351 = vpop.f32.mrf.mxu0
      %352 = vmatprep.mubr.bf16.mxu0 0
      %353 = vmatmul.mubr.bf16.gmra.mxu0 %v283
      %v354 = vpop.f32.mrf.mxu0
      %v355 = vadd.f32 %v218, %v354
      %v356 = vpop.f32.mrf.mxu0
      %v357 = vpop.f32.mrf.mxu0
      %v358 = vadd.f32 %v218, %v357
      %v359 = vpop.f32.mrf.mxu0
      %360 = vmatprep.mubr.bf16.mxu0 0
      %361 = vmatmul.mubr.bf16.gmra.mxu0 %v286
      %v362 = vpop.f32.mrf.mxu0
      %v363 = vadd.f32 %v218, %v362
      %v364 = vpop.f32.mrf.mxu0
      %v365 = vpop.f32.mrf.mxu0
      %v366 = vadd.f32 %v218, %v365
      %v367 = vpop.f32.mrf.mxu0
      %368 = vmatprep.mubr.bf16.mxu0 0
      %369 = vmatmul.mubr.bf16.gmra.mxu0 %v289
      %v370 = vpop.f32.mrf.mxu0
      %v371 = vadd.f32 %v218, %v370
      %v372 = vpop.f32.mrf.mxu0
      %v373 = vpop.f32.mrf.mxu0
      %v374 = vadd.f32 %v218, %v373
      %v375 = vpop.f32.mrf.mxu0
      %376 = vmatprep.mubr.bf16.mxu0 0
      %377 = vmatmul.mubr.bf16.gmra.mxu0 %v292
      %v378 = vpop.f32.mrf.mxu0
      %v379 = vadd.f32 %v218, %v378
      %v380 = vpop.f32.mrf.mxu0
      %v381 = vpop.f32.mrf.mxu0
      %v382 = vadd.f32 %v218, %v381
      %v383 = vpop.f32.mrf.mxu0
      %384 = vmatprep.mubr.bf16.mxu0 0
      %385 = vmatmul.mubr.bf16.gmra.mxu0 %v295
      %v386 = vpop.f32.mrf.mxu0
      %v387 = vadd.f32 %v218, %v386
      %v388 = vpop.f32.mrf.mxu0
      %v389 = vpop.f32.mrf.mxu0
      %v390 = vadd.f32 %v218, %v389
      %v391 = vpop.f32.mrf.mxu0
      %392 = vmatprep.mubr.bf16.mxu0 0
      %393 = vmatmul.mubr.bf16.gmra.mxu0 %v298
      %v394 = vpop.f32.mrf.mxu0
      %v395 = vadd.f32 %v218, %v394
      %v396 = vpop.f32.mrf.mxu0
      %v397 = vpop.f32.mrf.mxu0
      %v398 = vadd.f32 %v218, %v397
      %v399 = vpop.f32.mrf.mxu0
      %400 = vdwg.mxu0
      %v401 = vmax.f32 %v339, 0.0
      %v402 = vmax.f32 %v342, 0.0
      %v403 = vmax.f32 %v347, 0.0
      %v404 = vmax.f32 %v350, 0.0
      %v405 = vmax.f32 %v355, 0.0
      %v406 = vmax.f32 %v358, 0.0
      %v407 = vmax.f32 %v363, 0.0
      %v408 = vmax.f32 %v366, 0.0
      %v409 = vmax.f32 %v371, 0.0
      %v410 = vmax.f32 %v374, 0.0
      %v411 = vmax.f32 %v379, 0.0
      %v412 = vmax.f32 %v382, 0.0
      %v413 = vmax.f32 %v387, 0.0
      %v414 = vmax.f32 %v390, 0.0
      %v415 = vmax.f32 %v395, 0.0
      %v416 = vmax.f32 %v398, 0.0
      %s417 = smul.u32 %s15, 128
      %v418 = vlaneseq
      %v419 = vand.u32 %v418, 127
      %v420 = vstv %s417
      %v421 = vadd.s32 %v420, %v419
      %v422 = vlaneseq
      %v423 = vshrl.u32 %v422, 7
      %v424 = vmul.u32 %v423, 256
      %vm425 = vcmp.ge.s32.totalorder %v421, %v424
      %v426 = vadd.s32 %v424, 256
      %vm427 = vcmp.lt.s32.totalorder %v421, %v426
      %vm428 = vmand %vm425, %vm427
      %vm429 = vcmp.lt.s32.totalorder %v421, 512
      %vm430 = vmand %vm428, %vm429
      %v431 = vsel %vm430, 0.00390625, 0.0
      %v432 = vld [vmem:[#allocation2] sm:$0xff]
      %433 = vmatprep.subr.mxu0 0.0
      %434 = vmatpush1.msra.mxu0 %v416
      %435 = vmatprep.subr.mxu0 0.0
      %436 = vmatpush1.msra.mxu0 %v415
      %437 = vmatprep.subr.mxu0 0.0
      %438 = vmatpush1.msra.mxu0 %v414
      %439 = vmatprep.subr.mxu0 0.0
      %440 = vmatpush1.msra.mxu0 %v413
      %441 = vmatprep.subr.mxu0 0.0
      %442 = vmatpush1.msra.mxu0 %v412
      %443 = vmatprep.subr.mxu0 0.0
      %444 = vmatpush1.msra.mxu0 %v411
      %445 = vmatprep.subr.mxu0 0.0
      %446 = vmatpush1.msra.mxu0 %v410
      %447 = vmatprep.subr.mxu0 0.0
      %448 = vmatpush1.msra.mxu0 %v409
      %449 = vmatprep.subr.mxu0 0.0
      %450 = vmatpush1.msra.mxu0 %v408
      %451 = vmatprep.subr.mxu0 0.0
      %452 = vmatpush1.msra.mxu0 %v407
      %453 = vmatprep.subr.mxu0 0.0
      %454 = vmatpush1.msra.mxu0 %v406
      %455 = vmatprep.subr.mxu0 0.0
      %456 = vmatpush1.msra.mxu0 %v405
      %457 = vmatprep.subr.mxu0 0.0
      %458 = vmatpush1.msra.mxu0 %v404
      %459 = vmatprep.subr.mxu0 0.0
      %460 = vmatpush1.msra.mxu0 %v403
      %461 = vmatprep.subr.mxu0 0.0
      %462 = vmatpush1.msra.mxu0 %v402
      %463 = vmatprep.subr.mxu0 0.0
      %464 = vmatpush1.msra.mxu0 %v401
      %465 = vmatprep.subr.mxu0 0.0
      %466 = vmatpush2.msra.mxu0 0.0
      %467 = vmatprep.subr.mxu0 0.0
      %468 = vmatpush2.msra.mxu0 0.0
      %469 = vmatprep.subr.mxu0 0.0
      %470 = vmatpush2.msra.mxu0 0.0
      %471 = vmatprep.subr.mxu0 0.0
      %472 = vmatpush2.msra.mxu0 0.0
      %473 = vmatprep.subr.mxu0 0.0
      %474 = vmatpush2.msra.mxu0 0.0
      %475 = vmatprep.subr.mxu0 0.0
      %476 = vmatpush2.msra.mxu0 0.0
      %477 = vmatprep.subr.mxu0 0.0
      %478 = vmatpush2.msra.mxu0 0.0
      %479 = vmatprep.subr.mxu0 0.0
      %480 = vmatpush2.msra.mxu0 0.0
      %481 = vmatprep.subr.mxu0 0.0
      %482 = vmatpush2.msra.mxu0 0.0
      %483 = vmatprep.subr.mxu0 0.0
      %484 = vmatpush2.msra.mxu0 0.0
      %485 = vmatprep.subr.mxu0 0.0
      %486 = vmatpush2.msra.mxu0 0.0
      %487 = vmatprep.subr.mxu0 0.0
      %488 = vmatpush2.msra.mxu0 0.0
      %489 = vmatprep.subr.mxu0 0.0
      %490 = vmatpush2.msra.mxu0 0.0
      %491 = vmatprep.subr.mxu0 0.0
      %492 = vmatpush2.msra.mxu0 0.0
      %493 = vmatprep.subr.mxu0 0.0
      %494 = vmatpush2.msra.mxu0 0.0
      %495 = vmatprep.subr.mxu0 0.0
      %496 = vmatpush2.msra.mxu0 0.0
      %497 = vmatprep.mubr.f32.mxu0 0.0
      %498 = vmatmul.mubr.f32.gmra.mxu0 %v431
      %v499 = vpop.f32.mrf.mxu0
      %v500 = vadd.f32 0.0, %v499
      %v501 = vpop.f32.mrf.mxu0
      %502 = vdwg.mxu0
      %v503 = vadd.f32 %v432, %v500
      %vm504 = vcmask 261120
      %505 = vst.msk [vmem:[#allocation2] sm:$0xff] %vm504, %v503
      %p506 = scmp.eq.s32.totalorder %s15, 3
      // Predicated region
      $region41: #{attr_model_forward.1} parent=35 // pred_check
        %p507 = pneg %p506
      $region42: #{attr_model_forward.1} parent=35 // pred_check_branch
        %509 = sbr.rel (%p507) target = $region44
      $region43: #{attr_model_forward.1} parent=35 // pred_region
        %v510 = vld [vmem:[#allocation2] sm:$0xff]
        %v511 = vld [vmem:[%s3] sm:$0xff]
        %v512 = vld [vmem:[%s3 + $0x8] sm:$0xff]
        %v513 = vld [vmem:[%s3 + $0x10] sm:$0xff]
        %v514 = vld [vmem:[%s3 + $0x18] sm:$0xff]
        %v516 = vsel %vm504, %v510, 0
        %518 = vmatprep.subr.mxu0 0.0
        %519 = vmatpush1.msra.mxu0 0.0
        %520 = vmatprep.subr.mxu0 0.0
        %521 = vmatpush1.msra.mxu0 0.0
        %522 = vmatprep.subr.mxu0 0.0
        %523 = vmatpush1.msra.mxu0 0.0
        %524 = vmatprep.subr.mxu0 0.0
        %525 = vmatpush1.msra.mxu0 0.0
        %526 = vmatprep.subr.mxu0 0.0
        %527 = vmatpush1.msra.mxu0 0.0
        %528 = vmatprep.subr.mxu0 0.0
        %529 = vmatpush1.msra.mxu0 0.0
        %530 = vmatprep.subr.mxu0 0.0
        %531 = vmatpush1.msra.mxu0 0.0
        %532 = vmatprep.subr.mxu0 0.0
        %533 = vmatpush1.msra.mxu0 0.0
        %534 = vmatprep.subr.mxu0 0.0
        %535 = vmatpush1.msra.mxu0 0.0
        %536 = vmatprep.subr.mxu0 0.0
        %537 = vmatpush1.msra.mxu0 0.0
        %538 = vmatprep.subr.mxu0 0.0
        %539 = vmatpush1.msra.mxu0 0.0
        %540 = vmatprep.subr.mxu0 0.0
        %541 = vmatpush1.msra.mxu0 0.0
        %542 = vmatprep.subr.mxu0 0.0
        %543 = vmatpush1.msra.mxu0 %v514
        %544 = vmatprep.subr.mxu0 0.0
        %545 = vmatpush1.msra.mxu0 %v513
        %546 = vmatprep.subr.mxu0 0.0
        %547 = vmatpush1.msra.mxu0 %v512
        %548 = vmatprep.subr.mxu0 0.0
        %549 = vmatpush1.msra.mxu0 %v511
        %550 = vmatprep.subr.mxu0 0.0
        %551 = vmatpush2.msra.mxu0 0.0
        %552 = vmatprep.subr.mxu0 0.0
        %553 = vmatpush2.msra.mxu0 0.0
        %554 = vmatprep.subr.mxu0 0.0
        %555 = vmatpush2.msra.mxu0 0.0
        %556 = vmatprep.subr.mxu0 0.0
        %557 = vmatpush2.msra.mxu0 0.0
        %558 = vmatprep.subr.mxu0 0.0
        %559 = vmatpush2.msra.mxu0 0.0
        %560 = vmatprep.subr.mxu0 0.0
        %561 = vmatpush2.msra.mxu0 0.0
        %562 = vmatprep.subr.mxu0 0.0
        %563 = vmatpush2.msra.mxu0 0.0
        %564 = vmatprep.subr.mxu0 0.0
        %565 = vmatpush2.msra.mxu0 0.0
        %566 = vmatprep.subr.mxu0 0.0
        %567 = vmatpush2.msra.mxu0 0.0
        %568 = vmatprep.subr.mxu0 0.0
        %569 = vmatpush2.msra.mxu0 0.0
        %570 = vmatprep.subr.mxu0 0.0
        %571 = vmatpush2.msra.mxu0 0.0
        %572 = vmatprep.subr.mxu0 0.0
        %573 = vmatpush2.msra.mxu0 0.0
        %574 = vmatprep.subr.mxu0 0.0
        %575 = vmatpush2.msra.mxu0 0.0
        %576 = vmatprep.subr.mxu0 0.0
        %577 = vmatpush2.msra.mxu0 0.0
        %578 = vmatprep.subr.mxu0 0.0
        %579 = vmatpush2.msra.mxu0 0.0
        %580 = vmatprep.subr.mxu0 0.0
        %581 = vmatpush2.msra.mxu0 0.0
        %582 = vmatprep.mubr.f32.mxu0 0.0
        %583 = vmatmul.mubr.f32.gmra.mxu0 %v516
        %v584 = vpop.f32.mrf.mxu0
        %v585 = vadd.f32 0.0, %v584
        %v586 = vpop.f32.mrf.mxu0
        %587 = vdwg.mxu0
        %588 = vst [vmem:[%s4] sm:$0xff] %v585
      $region44: #{attr_model_forward.1} parent=35 // pred_fallthru
        _
      // Predicated region
      $region45: #{attr_model_forward.1} parent=35 // pred_check
        %p589 = pneg %p117
      $region46: #{attr_model_forward.1} parent=35 // pred_check_branch
        %591 = sbr.rel (%p589) target = $region48
      $region47: #{attr_model_forward.1} parent=35 // pred_region
        _
      $region48: #{attr_model_forward.1} parent=35 // pred_fallthru
        _
      // Predicated region
      $region49: #{attr_model_forward.1} parent=35 // pred_check
        %p592 = pneg %p117
      $region50: #{attr_model_forward.1} parent=35 // pred_check_branch
        %594 = sbr.rel (%p592) target = $region52
      $region51: #{attr_model_forward.1} parent=35 // pred_region
        _
      $region52: #{attr_model_forward.1} parent=35 // pred_fallthru
        _
    $region36: #{attr_model_forward.1} parent=5 // pred_fallthru
      _
    %p595 = scmp.le.s32.totalorder 2, %s10
    // Predicated region
    $region53: #{attr_model_forward.1} parent=5 // pred_check
      %p596 = pneg %p595
    $region54: #{attr_model_forward.1} parent=5 // pred_check_branch
      %598 = sbr.rel (%p596) target = $region56
    $region55: #{attr_model_forward.1} parent=5 // pred_region
      %s599 = ssub.s32 %s10, 2
    $region56: #{attr_model_forward.1} parent=5 // pred_fallthru
      _
  $region6: #{attr_model_forward.1} parent=0 // loop_footer
    %s14 = sadd.s32 1, %s10
  $region7: #{attr_model_forward.1} parent=0 // loop_footer_branch
    %9 = sbr.rel target = $region3
  $region8: #{attr_model_forward.1} parent=0 // loop_exit
    _

</llo_original>
